<compile_context>
chip_gen: v5e
topology: v5e:2x2
jax: 0.10.0
libtpu: 0.0.40
codegen_flags: <defaults>
</compile_context>

<pallas_src>
import jax
import jax.numpy as jnp
from jax.experimental import pallas as pl
from jax.experimental.pallas import tpu as pltpu

_LANE = 128
_SUBLANE = 8


def _round_up(x, m):
    return (x + m - 1) // m * m


def _encoder_kernel(x_ref,
                    w0_ref, b0_ref,
                    w1_ref, b1_ref,
                    w2_ref, b2_ref,
                    w3_ref, b3_ref,
                    wh_ref, bh_ref,
                    out_ref):
    # x arrives in its native dtype (f32); cast to the matmul compute dtype
    # in-kernel so the wrapper never writes a converted copy of the batch.
    cdt = w0_ref.dtype
    h = x_ref[...].astype(cdt)

    # MLP trunk: hidden layers with ReLU.  Dots accumulate in f32 on the MXU;
    # bias-add + ReLU run in f32 on the VPU (v5e has no bf16 VPU path), then
    # cast narrow only for the next dot.
    h = jnp.dot(h, w0_ref[...], preferred_element_type=jnp.float32) + b0_ref[...]
    h = jnp.maximum(h, 0.0).astype(cdt)
    h = jnp.dot(h, w1_ref[...], preferred_element_type=jnp.float32) + b1_ref[...]
    h = jnp.maximum(h, 0.0).astype(cdt)
    h = jnp.dot(h, w2_ref[...], preferred_element_type=jnp.float32) + b2_ref[...]
    h = jnp.maximum(h, 0.0).astype(cdt)

    # Final MLP layer (no ReLU inside MLP.forward) ...
    y = jnp.dot(h, w3_ref[...], preferred_element_type=jnp.float32) + b3_ref[...]
    # ... but ImageMLPEncoder.forward applies ReLU to the MLP output.
    y = jnp.maximum(y, 0.0).astype(cdt)

    # Fused mu/logvar heads -> one lane-dense (TB, 128) output slab.
    out_ref[...] = (jnp.dot(y, wh_ref[...], preferred_element_type=jnp.float32)
                    + bh_ref[...]).astype(out_ref.dtype)


def prepare_params(params, *, output_dim, compute_dtype=jnp.bfloat16):
    """One-time prep: fuse mu/logvar heads, zero-pad the fused head to a
    lane-dense (multiple-of-128) width, cast matmul weights to the compute
    dtype.  Biases stay f32 (elementwise path)."""
    (w0, b0), (w1, b1), (w2, b2), (w3, b3), (wmu, bmu), (wlv, blv) = params
    head_width = 2 * output_dim
    head_pad = _round_up(head_width, _LANE)
    wh = jnp.pad(jnp.concatenate([wmu, wlv], axis=1),
                 ((0, 0), (0, head_pad - head_width)))
    bh = jnp.pad(jnp.concatenate([bmu, blv], axis=1),
                 ((0, 0), (0, head_pad - head_width)))
    ws = [w.astype(compute_dtype) for w in (w0, w1, w2, w3, wh)]
    bs = [b.astype(jnp.float32) for b in (b0, b1, b2, b3, bh)]
    return ws, bs, head_pad


def image_mlp_encoder(x_nchw, params, *, height, width, channels, output_dim,
                      compute_dtype=jnp.bfloat16, out_dtype=jnp.float32,
                      batch_tile=2048):
    """x_nchw: (B, C, H, W) -> (mu, logvar), each (B, output_dim) out_dtype."""
    B = x_nchw.shape[0]
    d_in = height * width * channels
    x_flat = x_nchw.reshape(B, d_in)          # no dtype cast, no batch pad

    (w0, w1, w2, w3, wh), (b0, b1, b2, b3, bh), head_pad = prepare_params(
        params, output_dim=output_dim, compute_dtype=compute_dtype)
    weights = (w0, b0, w1, b1, w2, b2, w3, b3, wh, bh)

    # Batch tile: as big as batch_tile allows, but keep >= 4 grid steps so
    # v7x's two TensorCores both get work and BlockSpec pipelining has
    # something to overlap; always a multiple of 8 (sublane legality).
    tb = max(_SUBLANE, min(_round_up(batch_tile, _SUBLANE),
                           _round_up(pl.cdiv(B, 4), _SUBLANE)))
    grid = (pl.cdiv(B, tb),)                  # partial last block is fine: the
                                              # kernel is row-wise and OOB
                                              # writes are dropped by Pallas.

    def full_block(a):
        # Whole-array block with a constant index map -> stays resident in
        # VMEM across grid steps, not re-DMA'd.
        return pl.BlockSpec(a.shape, lambda i: (0, 0))

    in_specs = [pl.BlockSpec((tb, d_in), lambda i: (i, 0))]
    in_specs += [full_block(a) for a in weights]

    # Scoped-VMEM budget: double-buffered x / out tiles + resident params
    # (+ headroom).  v5e defaults to ~16 MiB scoped VMEM, so raise it; cap at
    # 64 MiB to respect v7x's smaller physical VMEM.
    x_tile_bytes = tb * d_in * x_flat.dtype.itemsize
    out_tile_bytes = tb * head_pad * jnp.dtype(out_dtype).itemsize
    param_bytes = sum(int(a.size) * a.dtype.itemsize for a in weights)
    vmem_limit = 2 * (x_tile_bytes + out_tile_bytes) + 2 * param_bytes + (4 << 20)
    vmem_limit = int(min(max(vmem_limit, 32 << 20), 64 << 20))

    # Advisory cost estimate so XLA schedules neighbouring ops sensibly.
    flops = 2 * B * sum(int(w.shape[0]) * int(w.shape[1])
                        for w in (w0, w1, w2, w3, wh))
    bytes_accessed = (B * (d_in * x_flat.dtype.itemsize
                           + head_pad * jnp.dtype(out_dtype).itemsize)
                      + param_bytes)

    out = pl.pallas_call(
        _encoder_kernel,
        out_shape=jax.ShapeDtypeStruct((B, head_pad), out_dtype),
        grid=grid,
        in_specs=in_specs,
        out_specs=pl.BlockSpec((tb, head_pad), lambda i: (i, 0)),
        compiler_params=pltpu.CompilerParams(
            dimension_semantics=("parallel",),
            vmem_limit_bytes=vmem_limit),
        cost_estimate=pl.CostEstimate(flops=flops, transcendentals=0,
                                      bytes_accessed=bytes_accessed),
    )(x_flat, *weights)

    mu = out[:, :output_dim]
    logvar = out[:, output_dim:2 * output_dim]
    return mu, logvar


def init_params(key, input_dim, hidden_dim, output_dim, num_layers=3):
    """Deterministic PyTorch-style init. Weights stored as (in, out)."""
    def linear(k, fan_in, fan_out):
        kw, kb = jax.random.split(k)
        bound = 1.0 / jnp.sqrt(fan_in)
        w = jax.random.uniform(kw, (fan_in, fan_out), jnp.float32, -bound, bound)
        b = jax.random.uniform(kb, (1, fan_out), jnp.float32, -bound, bound)
        return w, b

    dims = [(input_dim, hidden_dim)]
    dims += [(hidden_dim, hidden_dim)] * (num_layers - 1)
    dims += [(hidden_dim, output_dim)]          # final MLP layer
    dims += [(output_dim, output_dim)] * 2      # mu_linear, logvar_linear

    keys = jax.random.split(key, len(dims))
    return [linear(k, fi, fo) for k, (fi, fo) in zip(keys, dims)]


def _reference_forward(x_nchw, params, *, height, width, channels):
    """Pure-JAX f32 reference mirroring the PyTorch module."""
    B = x_nchw.shape[0]
    x = x_nchw.reshape(B, height * width * channels).astype(jnp.float32)
    (w0, b0), (w1, b1), (w2, b2), (w3, b3), (wmu, bmu), (wlv, blv) = params
    h = jnp.maximum(x @ w0 + b0, 0.0)
    h = jnp.maximum(h @ w1 + b1, 0.0)
    h = jnp.maximum(h @ w2 + b2, 0.0)
    y = jnp.maximum(h @ w3 + b3, 0.0)
    return y @ wmu + bmu, y @ wlv + blv


if __name__ == "__main__":
    # Small, module-consistent shapes.  B=20 is deliberately not a multiple of
    # the auto-chosen tile (tb=8) so the partial-tail-block path is exercised.
    B, C, H, W = 20, 4, 16, 16
    hidden_dim = 32
    output_dim = 16
    num_layers = 3
    input_dim = C * H * W

    key = jax.random.PRNGKey(0)
    kx, kp = jax.random.split(key)
    x = jax.random.normal(kx, (B, C, H, W), jnp.float32)
    params = init_params(kp, input_dim, hidden_dim, output_dim, num_layers)

    mu_ref, logvar_ref = _reference_forward(x, params, height=H, width=W, channels=C)

    # f32 matmul operands: tight check of kernel structure / layout / tiling.
    mu32, logvar32 = image_mlp_encoder(x, params, height=H, width=W, channels=C,
                                       output_dim=output_dim,
                                       compute_dtype=jnp.float32)
    jax.block_until_ready((mu32, logvar32))
    assert mu32.shape == (B, output_dim) and logvar32.shape == (B, output_dim)
    assert jnp.allclose(mu32, mu_ref, atol=1e-4, rtol=1e-4)
    assert jnp.allclose(logvar32, logvar_ref, atol=1e-4, rtol=1e-4)

    # Default bf16 matmul operands (f32 MXU accumulate, f32 output slab):
    # loose tolerance for the 1024-deep bf16 contraction.
    mu, logvar = image_mlp_encoder(x, params, height=H, width=W, channels=C,
                                   output_dim=output_dim)
    jax.block_until_ready((mu, logvar))
    assert mu.shape == (B, output_dim) and logvar.shape == (B, output_dim)
    assert jnp.allclose(mu, mu_ref, atol=5e-2, rtol=5e-2)
    assert jnp.allclose(logvar, logvar_ref, atol=5e-2, rtol=5e-2)

    # bf16 output slab (halves writeback traffic if the consumer tolerates it).
    mub, logvarb = image_mlp_encoder(x, params, height=H, width=W, channels=C,
                                     output_dim=output_dim,
                                     out_dtype=jnp.bfloat16)
    jax.block_until_ready((mub, logvarb))
    assert mub.dtype == jnp.bfloat16 and logvarb.dtype == jnp.bfloat16
    assert jnp.allclose(mub.astype(jnp.float32), mu_ref, atol=1e-1, rtol=1e-1)
    assert jnp.allclose(logvarb.astype(jnp.float32), logvar_ref, atol=1e-1, rtol=1e-1)

    print("KERNEL_OK")
</pallas_src>

<mosaic_0001>
module attributes {stable_mosaic.version = 11 : i64} {
  func.func @_encoder_kernel(%arg0: i32, %arg1: memref<8x1024xf32, #tpu.memory_space<vmem>>, %arg2: memref<1024x32xf32, #tpu.memory_space<vmem>>, %arg3: memref<1x32xf32, #tpu.memory_space<vmem>>, %arg4: memref<32x32xf32, #tpu.memory_space<vmem>>, %arg5: memref<1x32xf32, #tpu.memory_space<vmem>>, %arg6: memref<32x32xf32, #tpu.memory_space<vmem>>, %arg7: memref<1x32xf32, #tpu.memory_space<vmem>>, %arg8: memref<32x16xf32, #tpu.memory_space<vmem>>, %arg9: memref<1x16xf32, #tpu.memory_space<vmem>>, %arg10: memref<16x128xf32, #tpu.memory_space<vmem>>, %arg11: memref<1x128xf32, #tpu.memory_space<vmem>>, %arg12: memref<8x128xf32, #tpu.memory_space<vmem>>) attributes {dimension_semantics = [#tpu.dimension_semantics<parallel>], iteration_bounds = array<i64: 3>, scalar_prefetch = 0 : i64, scratch_operands = 0 : i64, tpu.core_type = #tpu.core_type<tc>, window_params = [{transform_indices = @transform_0, window_bounds = array<i64: 8, 1024>}, {pipeline_mode = #tpu.pipeline_mode<synchronous>, transform_indices = @transform_1, window_bounds = array<i64: 1024, 32>}, {pipeline_mode = #tpu.pipeline_mode<synchronous>, transform_indices = @transform_2, window_bounds = array<i64: 1, 32>}, {pipeline_mode = #tpu.pipeline_mode<synchronous>, transform_indices = @transform_3, window_bounds = array<i64: 32, 32>}, {pipeline_mode = #tpu.pipeline_mode<synchronous>, transform_indices = @transform_4, window_bounds = array<i64: 1, 32>}, {pipeline_mode = #tpu.pipeline_mode<synchronous>, transform_indices = @transform_5, window_bounds = array<i64: 32, 32>}, {pipeline_mode = #tpu.pipeline_mode<synchronous>, transform_indices = @transform_6, window_bounds = array<i64: 1, 32>}, {pipeline_mode = #tpu.pipeline_mode<synchronous>, transform_indices = @transform_7, window_bounds = array<i64: 32, 16>}, {pipeline_mode = #tpu.pipeline_mode<synchronous>, transform_indices = @transform_8, window_bounds = array<i64: 1, 16>}, {pipeline_mode = #tpu.pipeline_mode<synchronous>, transform_indices = @transform_9, window_bounds = array<i64: 16, 128>}, {pipeline_mode = #tpu.pipeline_mode<synchronous>, transform_indices = @transform_10, window_bounds = array<i64: 1, 128>}, {transform_indices = @transform_11, window_bounds = array<i64: 8, 128>}]} {
    %c0 = arith.constant 0 : index
    %c0_0 = arith.constant 0 : index
    %0 = vector.load %arg1[%c0, %c0_0] : memref<8x1024xf32, #tpu.memory_space<vmem>>, vector<8x1024xf32>
    %c0_1 = arith.constant 0 : index
    %c0_2 = arith.constant 0 : index
    %1 = vector.load %arg2[%c0_1, %c0_2] : memref<1024x32xf32, #tpu.memory_space<vmem>>, vector<1024x32xf32>
    %cst = arith.constant dense<0.000000e+00> : vector<8x32xf32>
    %2 = tpu.matmul %0, %1, %cst {dimension_numbers = #tpu.dot_dimension_numbers<[1], [0], [0], [1], [0, 0, 1, 1], [], []>} : vector<8x1024xf32>, vector<1024x32xf32>, vector<8x32xf32> -> vector<8x32xf32>
    %c0_3 = arith.constant 0 : index
    %c0_4 = arith.constant 0 : index
    %3 = vector.load %arg3[%c0_3, %c0_4] : memref<1x32xf32, #tpu.memory_space<vmem>>, vector<1x32xf32>
    %4 = vector.broadcast %3 : vector<1x32xf32> to vector<8x32xf32>
    %5 = arith.addf %2, %4 : vector<8x32xf32>
    %cst_5 = arith.constant 0.000000e+00 : f32
    %6 = vector.broadcast %cst_5 : f32 to vector<8x32xf32>
    %7 = arith.maximumf %5, %6 : vector<8x32xf32>
    %c0_6 = arith.constant 0 : index
    %c0_7 = arith.constant 0 : index
    %8 = vector.load %arg4[%c0_6, %c0_7] : memref<32x32xf32, #tpu.memory_space<vmem>>, vector<32x32xf32>
    %cst_8 = arith.constant dense<0.000000e+00> : vector<8x32xf32>
    %9 = tpu.matmul %7, %8, %cst_8 {dimension_numbers = #tpu.dot_dimension_numbers<[1], [0], [0], [1], [0, 0, 1, 1], [], []>} : vector<8x32xf32>, vector<32x32xf32>, vector<8x32xf32> -> vector<8x32xf32>
    %c0_9 = arith.constant 0 : index
    %c0_10 = arith.constant 0 : index
    %10 = vector.load %arg5[%c0_9, %c0_10] : memref<1x32xf32, #tpu.memory_space<vmem>>, vector<1x32xf32>
    %11 = vector.broadcast %10 : vector<1x32xf32> to vector<8x32xf32>
    %12 = arith.addf %9, %11 : vector<8x32xf32>
    %cst_11 = arith.constant 0.000000e+00 : f32
    %13 = vector.broadcast %cst_11 : f32 to vector<8x32xf32>
    %14 = arith.maximumf %12, %13 : vector<8x32xf32>
    %c0_12 = arith.constant 0 : index
    %c0_13 = arith.constant 0 : index
    %15 = vector.load %arg6[%c0_12, %c0_13] : memref<32x32xf32, #tpu.memory_space<vmem>>, vector<32x32xf32>
    %cst_14 = arith.constant dense<0.000000e+00> : vector<8x32xf32>
    %16 = tpu.matmul %14, %15, %cst_14 {dimension_numbers = #tpu.dot_dimension_numbers<[1], [0], [0], [1], [0, 0, 1, 1], [], []>} : vector<8x32xf32>, vector<32x32xf32>, vector<8x32xf32> -> vector<8x32xf32>
    %c0_15 = arith.constant 0 : index
    %c0_16 = arith.constant 0 : index
    %17 = vector.load %arg7[%c0_15, %c0_16] : memref<1x32xf32, #tpu.memory_space<vmem>>, vector<1x32xf32>
    %18 = vector.broadcast %17 : vector<1x32xf32> to vector<8x32xf32>
    %19 = arith.addf %16, %18 : vector<8x32xf32>
    %cst_17 = arith.constant 0.000000e+00 : f32
    %20 = vector.broadcast %cst_17 : f32 to vector<8x32xf32>
    %21 = arith.maximumf %19, %20 : vector<8x32xf32>
    %c0_18 = arith.constant 0 : index
    %c0_19 = arith.constant 0 : index
    %22 = vector.load %arg8[%c0_18, %c0_19] : memref<32x16xf32, #tpu.memory_space<vmem>>, vector<32x16xf32>
    %cst_20 = arith.constant dense<0.000000e+00> : vector<8x16xf32>
    %23 = tpu.matmul %21, %22, %cst_20 {dimension_numbers = #tpu.dot_dimension_numbers<[1], [0], [0], [1], [0, 0, 1, 1], [], []>} : vector<8x32xf32>, vector<32x16xf32>, vector<8x16xf32> -> vector<8x16xf32>
    %c0_21 = arith.constant 0 : index
    %c0_22 = arith.constant 0 : index
    %24 = vector.load %arg9[%c0_21, %c0_22] : memref<1x16xf32, #tpu.memory_space<vmem>>, vector<1x16xf32>
    %25 = vector.broadcast %24 : vector<1x16xf32> to vector<8x16xf32>
    %26 = arith.addf %23, %25 : vector<8x16xf32>
    %cst_23 = arith.constant 0.000000e+00 : f32
    %27 = vector.broadcast %cst_23 : f32 to vector<8x16xf32>
    %28 = arith.maximumf %26, %27 : vector<8x16xf32>
    %c0_24 = arith.constant 0 : index
    %c0_25 = arith.constant 0 : index
    %29 = vector.load %arg10[%c0_24, %c0_25] : memref<16x128xf32, #tpu.memory_space<vmem>>, vector<16x128xf32>
    %cst_26 = arith.constant dense<0.000000e+00> : vector<8x128xf32>
    %30 = tpu.matmul %28, %29, %cst_26 {dimension_numbers = #tpu.dot_dimension_numbers<[1], [0], [0], [1], [0, 0, 1, 1], [], []>} : vector<8x16xf32>, vector<16x128xf32>, vector<8x128xf32> -> vector<8x128xf32>
    %c0_27 = arith.constant 0 : index
    %c0_28 = arith.constant 0 : index
    %31 = vector.load %arg11[%c0_27, %c0_28] : memref<1x128xf32, #tpu.memory_space<vmem>>, vector<1x128xf32>
    %32 = vector.broadcast %31 : vector<1x128xf32> to vector<8x128xf32>
    %33 = arith.addf %30, %32 : vector<8x128xf32>
    %c0_29 = arith.constant 0 : index
    %c0_30 = arith.constant 0 : index
    %34 = vector.load %arg12[%c0_29, %c0_30] : memref<8x128xf32, #tpu.memory_space<vmem>>, vector<8x128xf32>
    tpu.vector_store %arg12[%c0_29, %c0_30], %33 {strides = array<i32>} : memref<8x128xf32, #tpu.memory_space<vmem>>, vector<8x128xf32>,
    return
  }
  func.func @transform_0(%arg0: i32) -> (i32, i32) {
    %c0_i32 = arith.constant 0 : i32
    %c0_i32_0 = arith.constant 0 : i32
    return %arg0, %c0_i32 : i32, i32
  }
  func.func @transform_1(%arg0: i32) -> (i32, i32) {
    %c0_i32 = arith.constant 0 : i32
    %c0_i32_0 = arith.constant 0 : i32
    %c0_i32_1 = arith.constant 0 : i32
    return %c0_i32, %c0_i32_0 : i32, i32
  }
  func.func @transform_2(%arg0: i32) -> (i32, i32) {
    %c0_i32 = arith.constant 0 : i32
    %c0_i32_0 = arith.constant 0 : i32
    %c0_i32_1 = arith.constant 0 : i32
    return %c0_i32, %c0_i32_0 : i32, i32
  }
  func.func @transform_3(%arg0: i32) -> (i32, i32) {
    %c0_i32 = arith.constant 0 : i32
    %c0_i32_0 = arith.constant 0 : i32
    %c0_i32_1 = arith.constant 0 : i32
    return %c0_i32, %c0_i32_0 : i32, i32
  }
  func.func @transform_4(%arg0: i32) -> (i32, i32) {
    %c0_i32 = arith.constant 0 : i32
    %c0_i32_0 = arith.constant 0 : i32
    %c0_i32_1 = arith.constant 0 : i32
    return %c0_i32, %c0_i32_0 : i32, i32
  }
  func.func @transform_5(%arg0: i32) -> (i32, i32) {
    %c0_i32 = arith.constant 0 : i32
    %c0_i32_0 = arith.constant 0 : i32
    %c0_i32_1 = arith.constant 0 : i32
    return %c0_i32, %c0_i32_0 : i32, i32
  }
  func.func @transform_6(%arg0: i32) -> (i32, i32) {
    %c0_i32 = arith.constant 0 : i32
    %c0_i32_0 = arith.constant 0 : i32
    %c0_i32_1 = arith.constant 0 : i32
    return %c0_i32, %c0_i32_0 : i32, i32
  }
  func.func @transform_7(%arg0: i32) -> (i32, i32) {
    %c0_i32 = arith.constant 0 : i32
    %c0_i32_0 = arith.constant 0 : i32
    %c0_i32_1 = arith.constant 0 : i32
    return %c0_i32, %c0_i32_0 : i32, i32
  }
  func.func @transform_8(%arg0: i32) -> (i32, i32) {
    %c0_i32 = arith.constant 0 : i32
    %c0_i32_0 = arith.constant 0 : i32
    %c0_i32_1 = arith.constant 0 : i32
    return %c0_i32, %c0_i32_0 : i32, i32
  }
  func.func @transform_9(%arg0: i32) -> (i32, i32) {
    %c0_i32 = arith.constant 0 : i32
    %c0_i32_0 = arith.constant 0 : i32
    %c0_i32_1 = arith.constant 0 : i32
    return %c0_i32, %c0_i32_0 : i32, i32
  }
  func.func @transform_10(%arg0: i32) -> (i32, i32) {
    %c0_i32 = arith.constant 0 : i32
    %c0_i32_0 = arith.constant 0 : i32
    %c0_i32_1 = arith.constant 0 : i32
    return %c0_i32, %c0_i32_0 : i32, i32
  }
  func.func @transform_11(%arg0: i32) -> (i32, i32) {
    %c0_i32 = arith.constant 0 : i32
    %c0_i32_0 = arith.constant 0 : i32
    return %arg0, %c0_i32 : i32, i32
  }
}

</mosaic_0001>

<llo_original>
// kernel: tpu_custom_call.1
$region0: #{tpu_custom_call.1}
  #allocation0 [shape = 'u32[]', space=smem, size = 0x4, offset = 0x4, fixed_abs, tag = 'smem constant byte address 0x4 - core index']
  #allocation1 [shape = 'u32[72,128]{1,0:T(1,128)}', space=vmem, size = 0x9000, scoped, tag = 'internal scratch']
  %s0 = inlined_call_operand.vmem [shape: f32[20,1024], index: 0, kind: input, shape index: {}]
  %s1 = inlined_call_operand.vmem [shape: f32[1024,32], index: 1, kind: input, shape index: {}]
  %s2 = inlined_call_operand.vmem [shape: f32[1,32], index: 2, kind: input, shape index: {}]
  %s3 = inlined_call_operand.vmem [shape: f32[32,32], index: 3, kind: input, shape index: {}]
  %s4 = inlined_call_operand.vmem [shape: f32[1,32], index: 4, kind: input, shape index: {}]
  %s5 = inlined_call_operand.vmem [shape: f32[32,32], index: 5, kind: input, shape index: {}]
  %s6 = inlined_call_operand.vmem [shape: f32[1,32], index: 6, kind: input, shape index: {}]
  %s7 = inlined_call_operand.vmem [shape: f32[32,16], index: 7, kind: input, shape index: {}]
  %s8 = inlined_call_operand.vmem [shape: f32[1,16], index: 8, kind: input, shape index: {}]
  %s9 = inlined_call_operand.vmem [shape: f32[16,128], index: 9, kind: input, shape index: {}]
  %s10 = inlined_call_operand.vmem [shape: f32[1,128], index: 10, kind: input, shape index: {}]
  %s11 = inlined_call_operand.hbm [shape: f32[20,128], index: 11, kind: output, shape index: {}]
  %s12 = sld [smem:[#allocation0]]
  $region77: #{tpu_custom_call.1} parent=0
    _
  %s14 = ssub.s32 1, %s12
  %s15 = scalar_select 0, %s14, %s12
  $region1: #{tpu_custom_call.1} parent=0
    #allocation2 [shape = 'u8[8192]{0}', space=vmem, size = 0x2000, scoped, tag = 'output window, operand 0']
    #allocation3 [shape = 's32[2]{0}', space=sflag, size = 0x8, scoped, tag = 'scoped memory for tpu_custom_call.1']
    %16 = vsyncpa [#allocation3], 0
    %s17 = scalar_lea.sflag [#allocation3], 1
    %18 = vsyncpa %s17, 0
    loop: start=0, step=1, limit=5
    $region2: #{tpu_custom_call.1} parent=1 // loop_pre_header
      _
    $region3: #{tpu_custom_call.1} parent=1 // loop_header
      %s20 = sphi 0, %s24
      %p21 = scmp.ge.s32.totalorder %s20, 5
      %s30 = sphi 0, %s32
      %s33 = sphi 0, %s30
      %s34 = sphi 0, %s33
      %s50 = sphi 0, %s34
      %s54 = sphi 0, %s54
      %s56 = sphi 0, %s54
      %s57 = sphi 0, %s56
      %s71 = sphi 0, %s57
      %s75 = sphi 0, %s75
      %s77 = sphi 0, %s75
      %s78 = sphi 0, %s77
      %s92 = sphi 0, %s78
      %s96 = sphi 0, %s96
      %s98 = sphi 0, %s96
      %s99 = sphi 0, %s98
      %s113 = sphi 0, %s99
      %s117 = sphi 0, %s117
      %s119 = sphi 0, %s117
      %s120 = sphi 0, %s119
      %s134 = sphi 0, %s120
      %s138 = sphi 0, %s138
      %s140 = sphi 0, %s138
      %s141 = sphi 0, %s140
      %s155 = sphi 0, %s141
      %s159 = sphi 0, %s159
      %s161 = sphi 0, %s159
      %s162 = sphi 0, %s161
      %s176 = sphi 0, %s162
      %s180 = sphi 0, %s180
      %s182 = sphi 0, %s180
      %s183 = sphi 0, %s182
      %s197 = sphi 0, %s183
      %s201 = sphi 0, %s201
      %s203 = sphi 0, %s201
      %s204 = sphi 0, %s203
      %s218 = sphi 0, %s204
      %s222 = sphi 0, %s222
      %s224 = sphi 0, %s222
      %s225 = sphi 0, %s224
      %s239 = sphi 0, %s225
      %s243 = sphi 0, %s243
      %s245 = sphi 0, %s243
      %s246 = sphi 0, %s245
      %s260 = sphi 0, %s246
      %s266 = sphi 0, %s268
      %s269 = sphi 0, %s266
      %s270 = sphi 0, %s269
      %s286 = sphi 0, %s270
    $region4: #{tpu_custom_call.1} parent=1 // loop_header_branch
      %23 = sbr.rel (%p21) target = $region8
    $region5: #{tpu_custom_call.1} parent=1 // loop_body
      %s25 = ssub.s32 %s20, 1
      %s26 = ssub.s32 %s20, 2
      %s27 = sadd.s32 %s20, 1
      %s28 = ssub.s32 %s20, %s27
      %p29 = scmp.eq.s32.totalorder %s28, 0
      %s31 = sadd.s32 %s30, 1
      %s32 = scalar_select %p29, %s30, %s31
      %p35 = pneg %p29
      %p36 = scmp.eq.s32.totalorder %s20, 2
      %p37 = por %p35, %p36
      %p38 = scmp.ne.s32.totalorder %s30, %s33
      %p39 = scmp.eq.s32.totalorder %s20, 0
      %p40 = por %p38, %p39
      %p41 = scmp.ne.s32.totalorder %s30, %s33
      %p42 = scmp.eq.s32.totalorder %s25, 2
      %p43 = por %p41, %p42
      %p44 = scmp.ne.s32.totalorder %s33, %s34
      %p45 = scmp.eq.s32.totalorder %s25, 0
      %p46 = por %p44, %p45
      %p47 = scmp.ne.s32.totalorder %s33, %s34
      %p48 = scmp.eq.s32.totalorder %s26, 2
      %p49 = por %p47, %p48
      %p51 = scmp.ne.s32.totalorder %s34, %s50
      %p52 = scmp.eq.s32.totalorder %s26, 0
      %p53 = por %p51, %p52
      %s55 = sadd.s32 %s54, 1
      %p58 = scmp.eq.s32.totalorder %s20, 2
      %p59 = scmp.ne.s32.totalorder %s54, %s56
      %p60 = scmp.eq.s32.totalorder %s20, 0
      %p61 = por %p59, %p60
      %p62 = scmp.ne.s32.totalorder %s54, %s56
      %p63 = scmp.eq.s32.totalorder %s25, 2
      %p64 = por %p62, %p63
      %p65 = scmp.ne.s32.totalorder %s56, %s57
      %p66 = scmp.eq.s32.totalorder %s25, 0
      %p67 = por %p65, %p66
      %p68 = scmp.ne.s32.totalorder %s56, %s57
      %p69 = scmp.eq.s32.totalorder %s26, 2
      %p70 = por %p68, %p69
      %p72 = scmp.ne.s32.totalorder %s57, %s71
      %p73 = scmp.eq.s32.totalorder %s26, 0
      %p74 = por %p72, %p73
      %s76 = sadd.s32 %s75, 1
      %p79 = scmp.eq.s32.totalorder %s20, 2
      %p80 = scmp.ne.s32.totalorder %s75, %s77
      %p81 = scmp.eq.s32.totalorder %s20, 0
      %p82 = por %p80, %p81
      %p83 = scmp.ne.s32.totalorder %s75, %s77
      %p84 = scmp.eq.s32.totalorder %s25, 2
      %p85 = por %p83, %p84
      %p86 = scmp.ne.s32.totalorder %s77, %s78
      %p87 = scmp.eq.s32.totalorder %s25, 0
      %p88 = por %p86, %p87
      %p89 = scmp.ne.s32.totalorder %s77, %s78
      %p90 = scmp.eq.s32.totalorder %s26, 2
      %p91 = por %p89, %p90
      %p93 = scmp.ne.s32.totalorder %s78, %s92
      %p94 = scmp.eq.s32.totalorder %s26, 0
      %p95 = por %p93, %p94
      %s97 = sadd.s32 %s96, 1
      %p100 = scmp.eq.s32.totalorder %s20, 2
      %p101 = scmp.ne.s32.totalorder %s96, %s98
      %p102 = scmp.eq.s32.totalorder %s20, 0
      %p103 = por %p101, %p102
      %p104 = scmp.ne.s32.totalorder %s96, %s98
      %p105 = scmp.eq.s32.totalorder %s25, 2
      %p106 = por %p104, %p105
      %p107 = scmp.ne.s32.totalorder %s98, %s99
      %p108 = scmp.eq.s32.totalorder %s25, 0
      %p109 = por %p107, %p108
      %p110 = scmp.ne.s32.totalorder %s98, %s99
      %p111 = scmp.eq.s32.totalorder %s26, 2
      %p112 = por %p110, %p111
      %p114 = scmp.ne.s32.totalorder %s99, %s113
      %p115 = scmp.eq.s32.totalorder %s26, 0
      %p116 = por %p114, %p115
      %s118 = sadd.s32 %s117, 1
      %p121 = scmp.eq.s32.totalorder %s20, 2
      %p122 = scmp.ne.s32.totalorder %s117, %s119
      %p123 = scmp.eq.s32.totalorder %s20, 0
      %p124 = por %p122, %p123
      %p125 = scmp.ne.s32.totalorder %s117, %s119
      %p126 = scmp.eq.s32.totalorder %s25, 2
      %p127 = por %p125, %p126
      %p128 = scmp.ne.s32.totalorder %s119, %s120
      %p129 = scmp.eq.s32.totalorder %s25, 0
      %p130 = por %p128, %p129
      %p131 = scmp.ne.s32.totalorder %s119, %s120
      %p132 = scmp.eq.s32.totalorder %s26, 2
      %p133 = por %p131, %p132
      %p135 = scmp.ne.s32.totalorder %s120, %s134
      %p136 = scmp.eq.s32.totalorder %s26, 0
      %p137 = por %p135, %p136
      %s139 = sadd.s32 %s138, 1
      %p142 = scmp.eq.s32.totalorder %s20, 2
      %p143 = scmp.ne.s32.totalorder %s138, %s140
      %p144 = scmp.eq.s32.totalorder %s20, 0
      %p145 = por %p143, %p144
      %p146 = scmp.ne.s32.totalorder %s138, %s140
      %p147 = scmp.eq.s32.totalorder %s25, 2
      %p148 = por %p146, %p147
      %p149 = scmp.ne.s32.totalorder %s140, %s141
      %p150 = scmp.eq.s32.totalorder %s25, 0
      %p151 = por %p149, %p150
      %p152 = scmp.ne.s32.totalorder %s140, %s141
      %p153 = scmp.eq.s32.totalorder %s26, 2
      %p154 = por %p152, %p153
      %p156 = scmp.ne.s32.totalorder %s141, %s155
      %p157 = scmp.eq.s32.totalorder %s26, 0
      %p158 = por %p156, %p157
      %s160 = sadd.s32 %s159, 1
      %p163 = scmp.eq.s32.totalorder %s20, 2
      %p164 = scmp.ne.s32.totalorder %s159, %s161
      %p165 = scmp.eq.s32.totalorder %s20, 0
      %p166 = por %p164, %p165
      %p167 = scmp.ne.s32.totalorder %s159, %s161
      %p168 = scmp.eq.s32.totalorder %s25, 2
      %p169 = por %p167, %p168
      %p170 = scmp.ne.s32.totalorder %s161, %s162
      %p171 = scmp.eq.s32.totalorder %s25, 0
      %p172 = por %p170, %p171
      %p173 = scmp.ne.s32.totalorder %s161, %s162
      %p174 = scmp.eq.s32.totalorder %s26, 2
      %p175 = por %p173, %p174
      %p177 = scmp.ne.s32.totalorder %s162, %s176
      %p178 = scmp.eq.s32.totalorder %s26, 0
      %p179 = por %p177, %p178
      %s181 = sadd.s32 %s180, 1
      %p184 = scmp.eq.s32.totalorder %s20, 2
      %p185 = scmp.ne.s32.totalorder %s180, %s182
      %p186 = scmp.eq.s32.totalorder %s20, 0
      %p187 = por %p185, %p186
      %p188 = scmp.ne.s32.totalorder %s180, %s182
      %p189 = scmp.eq.s32.totalorder %s25, 2
      %p190 = por %p188, %p189
      %p191 = scmp.ne.s32.totalorder %s182, %s183
      %p192 = scmp.eq.s32.totalorder %s25, 0
      %p193 = por %p191, %p192
      %p194 = scmp.ne.s32.totalorder %s182, %s183
      %p195 = scmp.eq.s32.totalorder %s26, 2
      %p196 = por %p194, %p195
      %p198 = scmp.ne.s32.totalorder %s183, %s197
      %p199 = scmp.eq.s32.totalorder %s26, 0
      %p200 = por %p198, %p199
      %s202 = sadd.s32 %s201, 1
      %p205 = scmp.eq.s32.totalorder %s20, 2
      %p206 = scmp.ne.s32.totalorder %s201, %s203
      %p207 = scmp.eq.s32.totalorder %s20, 0
      %p208 = por %p206, %p207
      %p209 = scmp.ne.s32.totalorder %s201, %s203
      %p210 = scmp.eq.s32.totalorder %s25, 2
      %p211 = por %p209, %p210
      %p212 = scmp.ne.s32.totalorder %s203, %s204
      %p213 = scmp.eq.s32.totalorder %s25, 0
      %p214 = por %p212, %p213
      %p215 = scmp.ne.s32.totalorder %s203, %s204
      %p216 = scmp.eq.s32.totalorder %s26, 2
      %p217 = por %p215, %p216
      %p219 = scmp.ne.s32.totalorder %s204, %s218
      %p220 = scmp.eq.s32.totalorder %s26, 0
      %p221 = por %p219, %p220
      %s223 = sadd.s32 %s222, 1
      %p226 = scmp.eq.s32.totalorder %s20, 2
      %p227 = scmp.ne.s32.totalorder %s222, %s224
      %p228 = scmp.eq.s32.totalorder %s20, 0
      %p229 = por %p227, %p228
      %p230 = scmp.ne.s32.totalorder %s222, %s224
      %p231 = scmp.eq.s32.totalorder %s25, 2
      %p232 = por %p230, %p231
      %p233 = scmp.ne.s32.totalorder %s224, %s225
      %p234 = scmp.eq.s32.totalorder %s25, 0
      %p235 = por %p233, %p234
      %p236 = scmp.ne.s32.totalorder %s224, %s225
      %p237 = scmp.eq.s32.totalorder %s26, 2
      %p238 = por %p236, %p237
      %p240 = scmp.ne.s32.totalorder %s225, %s239
      %p241 = scmp.eq.s32.totalorder %s26, 0
      %p242 = por %p240, %p241
      %s244 = sadd.s32 %s243, 1
      %p247 = scmp.eq.s32.totalorder %s20, 2
      %p248 = scmp.ne.s32.totalorder %s243, %s245
      %p249 = scmp.eq.s32.totalorder %s20, 0
      %p250 = por %p248, %p249
      %p251 = scmp.ne.s32.totalorder %s243, %s245
      %p252 = scmp.eq.s32.totalorder %s25, 2
      %p253 = por %p251, %p252
      %p254 = scmp.ne.s32.totalorder %s245, %s246
      %p255 = scmp.eq.s32.totalorder %s25, 0
      %p256 = por %p254, %p255
      %p257 = scmp.ne.s32.totalorder %s245, %s246
      %p258 = scmp.eq.s32.totalorder %s26, 2
      %p259 = por %p257, %p258
      %p261 = scmp.ne.s32.totalorder %s246, %s260
      %p262 = scmp.eq.s32.totalorder %s26, 0
      %p263 = por %p261, %p262
      %s264 = ssub.s32 %s20, %s27
      %p265 = scmp.eq.s32.totalorder %s264, 0
      %s267 = sadd.s32 %s266, 1
      %s268 = scalar_select %p265, %s266, %s267
      %p271 = pneg %p265
      %p272 = scmp.eq.s32.totalorder %s20, 2
      %p273 = por %p271, %p272
      %p274 = scmp.ne.s32.totalorder %s266, %s269
      %p275 = scmp.eq.s32.totalorder %s20, 0
      %p276 = por %p274, %p275
      %p277 = scmp.ne.s32.totalorder %s266, %s269
      %p278 = scmp.eq.s32.totalorder %s25, 2
      %p279 = por %p277, %p278
      %p280 = scmp.ne.s32.totalorder %s269, %s270
      %p281 = scmp.eq.s32.totalorder %s25, 0
      %p282 = por %p280, %p281
      %p283 = scmp.ne.s32.totalorder %s269, %s270
      %p284 = scmp.eq.s32.totalorder %s26, 2
      %p285 = por %p283, %p284
      %p287 = scmp.ne.s32.totalorder %s270, %s286
      %p288 = scmp.eq.s32.totalorder %s26, 0
      %p289 = por %p287, %p288
      %p290 = scmp.le.s32.totalorder 1, %s20
      %p291 = scmp.lt.s32.totalorder %s20, 4
      %p292 = pnand %p290, %p291
      %p293 = pneg %p292
      // Predicated region
      $region9: #{tpu_custom_call.1} parent=5 // pred_check
        _
      $region10: #{tpu_custom_call.1} parent=5 // pred_check_branch
        %295 = sbr.rel (%p292) target = $region12
      $region11: #{tpu_custom_call.1} parent=5 // pred_region
        %s296 = ssub.s32 %s20, 1
        // Predicated region
        $region13: #{tpu_custom_call.1} parent=11 // pred_check
          %p297 = pneg %p67
        $region14: #{tpu_custom_call.1} parent=11 // pred_check_branch
          %299 = sbr.rel (%p297) target = $region16
        $region15: #{tpu_custom_call.1} parent=11 // pred_region
          _
        $region16: #{tpu_custom_call.1} parent=11 // pred_fallthru
          _
        // Predicated region
        $region17: #{tpu_custom_call.1} parent=11 // pred_check
          %p300 = pneg %p88
        $region18: #{tpu_custom_call.1} parent=11 // pred_check_branch
          %302 = sbr.rel (%p300) target = $region20
        $region19: #{tpu_custom_call.1} parent=11 // pred_region
          _
        $region20: #{tpu_custom_call.1} parent=11 // pred_fallthru
          _
        // Predicated region
        $region21: #{tpu_custom_call.1} parent=11 // pred_check
          %p303 = pneg %p109
        $region22: #{tpu_custom_call.1} parent=11 // pred_check_branch
          %305 = sbr.rel (%p303) target = $region24
        $region23: #{tpu_custom_call.1} parent=11 // pred_region
          _
        $region24: #{tpu_custom_call.1} parent=11 // pred_fallthru
          _
        // Predicated region
        $region25: #{tpu_custom_call.1} parent=11 // pred_check
          %p306 = pneg %p130
        $region26: #{tpu_custom_call.1} parent=11 // pred_check_branch
          %308 = sbr.rel (%p306) target = $region28
        $region27: #{tpu_custom_call.1} parent=11 // pred_region
          _
        $region28: #{tpu_custom_call.1} parent=11 // pred_fallthru
          _
        // Predicated region
        $region29: #{tpu_custom_call.1} parent=11 // pred_check
          %p309 = pneg %p151
        $region30: #{tpu_custom_call.1} parent=11 // pred_check_branch
          %311 = sbr.rel (%p309) target = $region32
        $region31: #{tpu_custom_call.1} parent=11 // pred_region
          _
        $region32: #{tpu_custom_call.1} parent=11 // pred_fallthru
          _
        // Predicated region
        $region33: #{tpu_custom_call.1} parent=11 // pred_check
          %p312 = pneg %p172
        $region34: #{tpu_custom_call.1} parent=11 // pred_check_branch
          %314 = sbr.rel (%p312) target = $region36
        $region35: #{tpu_custom_call.1} parent=11 // pred_region
          _
        $region36: #{tpu_custom_call.1} parent=11 // pred_fallthru
          _
        // Predicated region
        $region37: #{tpu_custom_call.1} parent=11 // pred_check
          %p315 = pneg %p193
        $region38: #{tpu_custom_call.1} parent=11 // pred_check_branch
          %317 = sbr.rel (%p315) target = $region40
        $region39: #{tpu_custom_call.1} parent=11 // pred_region
          _
        $region40: #{tpu_custom_call.1} parent=11 // pred_fallthru
          _
        // Predicated region
        $region41: #{tpu_custom_call.1} parent=11 // pred_check
          %p318 = pneg %p214
        $region42: #{tpu_custom_call.1} parent=11 // pred_check_branch
          %320 = sbr.rel (%p318) target = $region44
        $region43: #{tpu_custom_call.1} parent=11 // pred_region
          _
        $region44: #{tpu_custom_call.1} parent=11 // pred_fallthru
          _
        // Predicated region
        $region45: #{tpu_custom_call.1} parent=11 // pred_check
          %p321 = pneg %p235
        $region46: #{tpu_custom_call.1} parent=11 // pred_check_branch
          %323 = sbr.rel (%p321) target = $region48
        $region47: #{tpu_custom_call.1} parent=11 // pred_region
          _
        $region48: #{tpu_custom_call.1} parent=11 // pred_fallthru
          _
        // Predicated region
        $region49: #{tpu_custom_call.1} parent=11 // pred_check
          %p324 = pneg %p256
        $region50: #{tpu_custom_call.1} parent=11 // pred_check_branch
          %326 = sbr.rel (%p324) target = $region52
        $region51: #{tpu_custom_call.1} parent=11 // pred_region
          _
        $region52: #{tpu_custom_call.1} parent=11 // pred_fallthru
          _
      $region12: #{tpu_custom_call.1} parent=5 // pred_fallthru
        _
      %p327 = scmp.lt.s32.totalorder %s20, 3
      // Predicated region
      $region53: #{tpu_custom_call.1} parent=5 // pred_check
        %p328 = pneg %p327
      $region54: #{tpu_custom_call.1} parent=5 // pred_check_branch
        %330 = sbr.rel (%p328) target = $region56
      $region55: #{tpu_custom_call.1} parent=5 // pred_region
        // Predicated region
        $region57: #{tpu_custom_call.1} parent=55 // pred_check
          %p331 = pneg %p40
        $region58: #{tpu_custom_call.1} parent=55 // pred_check_branch
          %333 = sbr.rel (%p331) target = $region60
        $region59: #{tpu_custom_call.1} parent=55 // pred_region
          %p334 = scmp.lt.s32.totalorder %s20, 2
          %s335 = scalar_select %p334, %s20, 2
          %s336 = smul.addr %s335, 8
          %s337 = smul.addr %s336, 8
          %s338 = scalar_lea.vmem %s0, %s337
        $region60: #{tpu_custom_call.1} parent=55 // pred_fallthru
          _
      $region56: #{tpu_custom_call.1} parent=5 // pred_fallthru
        _
      %p339 = scmp.le.s32.totalorder 1, %s20
      %p340 = scmp.lt.s32.totalorder %s20, 4
      %p341 = pnand %p339, %p340
      %p342 = pneg %p341
      // Predicated region
      $region61: #{tpu_custom_call.1} parent=5 // pred_check
        _
      $region62: #{tpu_custom_call.1} parent=5 // pred_check_branch
        %344 = sbr.rel (%p341) target = $region64
      $region63: #{tpu_custom_call.1} parent=5 // pred_region
        %s345 = ssub.s32 %s20, 1
        %p346 = scmp.lt.s32.totalorder %s25, 2
        %s347 = scalar_select %p346, %s25, 2
        %s348 = smul.addr %s347, 8
        %s349 = smul.addr %s348, 8
        %s350 = scalar_lea.vmem %s0, %s349
        %p351 = pneg %p46
        %p352 = pneg %p43
        %p353 = pneg %p67
        %p354 = pneg %p64
        %p355 = pneg %p88
        %p356 = pneg %p85
        %p357 = pneg %p109
        %p358 = pneg %p106
        %p359 = pneg %p130
        %p360 = pneg %p127
        %p361 = pneg %p151
        %p362 = pneg %p148
        %p363 = pneg %p172
        %p364 = pneg %p169
        %p365 = pneg %p193
        %p366 = pneg %p190
        %p367 = pneg %p214
        %p368 = pneg %p211
        %p369 = pneg %p235
        %p370 = pneg %p232
        %p371 = pneg %p256
        %p372 = pneg %p253
        %p373 = pneg %p282
        %p374 = pneg %p279
        %s375 = sand.u32 %s269, 1
        %s376 = scalar_lea.sflag [#allocation3], %s375
        %s377 = sand.u32 %s269, 1
        %s378 = smul.addr %s377, 8
        %s379 = scalar_lea.vmem [#allocation2], %s378
        %p380 = scmp.lt.s32.totalorder %s25, 2
        %s381 = scalar_select %p380, %s25, 2
        %s382 = smul.addr %s381, 8
        %s383 = smul.addr %s382, 8
        %s384 = scalar_lea.vmem %s0, %s383
        %v385 = vld [vmem:[%s384] sm:$0xff]
        %v386 = vld [vmem:[%s384 + $0x8] sm:$0xff]
        %v387 = vld [vmem:[%s384 + $0x10] sm:$0xff]
        %v388 = vld [vmem:[%s384 + $0x18] sm:$0xff]
        %v389 = vld [vmem:[%s384 + $0x20] sm:$0xff]
        %v390 = vld [vmem:[%s384 + $0x28] sm:$0xff]
        %v391 = vld [vmem:[%s384 + $0x30] sm:$0xff]
        %v392 = vld [vmem:[%s384 + $0x38] sm:$0xff]
        %v393 = vld [vmem:[%s1] sm:$0xff]
        %v394 = vld [vmem:[%s1 + $0x8] sm:$0xff]
        %v395 = vld [vmem:[%s1 + $0x10] sm:$0xff]
        %v396 = vld [vmem:[%s1 + $0x18] sm:$0xff]
        %v397 = vld [vmem:[%s1 + $0x20] sm:$0xff]
        %v398 = vld [vmem:[%s1 + $0x28] sm:$0xff]
        %v399 = vld [vmem:[%s1 + $0x30] sm:$0xff]
        %v400 = vld [vmem:[%s1 + $0x38] sm:$0xff]
        %v401 = vld [vmem:[%s1 + $0x40] sm:$0xff]
        %v402 = vld [vmem:[%s1 + $0x48] sm:$0xff]
        %v403 = vld [vmem:[%s1 + $0x50] sm:$0xff]
        %v404 = vld [vmem:[%s1 + $0x58] sm:$0xff]
        %v405 = vld [vmem:[%s1 + $0x60] sm:$0xff]
        %v406 = vld [vmem:[%s1 + $0x68] sm:$0xff]
        %v407 = vld [vmem:[%s1 + $0x70] sm:$0xff]
        %v408 = vld [vmem:[%s1 + $0x78] sm:$0xff]
        %v409 = vld [vmem:[%s1 + $0x80] sm:$0xff]
        %v410 = vld [vmem:[%s1 + $0x88] sm:$0xff]
        %v411 = vld [vmem:[%s1 + $0x90] sm:$0xff]
        %v412 = vld [vmem:[%s1 + $0x98] sm:$0xff]
        %v413 = vld [vmem:[%s1 + $0xa0] sm:$0xff]
        %v414 = vld [vmem:[%s1 + $0xa8] sm:$0xff]
        %v415 = vld [vmem:[%s1 + $0xb0] sm:$0xff]
        %v416 = vld [vmem:[%s1 + $0xb8] sm:$0xff]
        %v417 = vld [vmem:[%s1 + $0xc0] sm:$0xff]
        %v418 = vld [vmem:[%s1 + $0xc8] sm:$0xff]
        %v419 = vld [vmem:[%s1 + $0xd0] sm:$0xff]
        %v420 = vld [vmem:[%s1 + $0xd8] sm:$0xff]
        %v421 = vld [vmem:[%s1 + $0xe0] sm:$0xff]
        %v422 = vld [vmem:[%s1 + $0xe8] sm:$0xff]
        %v423 = vld [vmem:[%s1 + $0xf0] sm:$0xff]
        %v424 = vld [vmem:[%s1 + $0xf8] sm:$0xff]
        %v425 = vld [vmem:[%s1 + $0x100] sm:$0xff]
        %v426 = vld [vmem:[%s1 + $0x108] sm:$0xff]
        %v427 = vld [vmem:[%s1 + $0x110] sm:$0xff]
        %v428 = vld [vmem:[%s1 + $0x118] sm:$0xff]
        %v429 = vld [vmem:[%s1 + $0x120] sm:$0xff]
        %v430 = vld [vmem:[%s1 + $0x128] sm:$0xff]
        %v431 = vld [vmem:[%s1 + $0x130] sm:$0xff]
        %v432 = vld [vmem:[%s1 + $0x138] sm:$0xff]
        %v433 = vld [vmem:[%s1 + $0x140] sm:$0xff]
        %v434 = vld [vmem:[%s1 + $0x148] sm:$0xff]
        %v435 = vld [vmem:[%s1 + $0x150] sm:$0xff]
        %v436 = vld [vmem:[%s1 + $0x158] sm:$0xff]
        %v437 = vld [vmem:[%s1 + $0x160] sm:$0xff]
        %v438 = vld [vmem:[%s1 + $0x168] sm:$0xff]
        %v439 = vld [vmem:[%s1 + $0x170] sm:$0xff]
        %v440 = vld [vmem:[%s1 + $0x178] sm:$0xff]
        %v441 = vld [vmem:[%s1 + $0x180] sm:$0xff]
        %v442 = vld [vmem:[%s1 + $0x188] sm:$0xff]
        %v443 = vld [vmem:[%s1 + $0x190] sm:$0xff]
        %v444 = vld [vmem:[%s1 + $0x198] sm:$0xff]
        %v445 = vld [vmem:[%s1 + $0x1a0] sm:$0xff]
        %v446 = vld [vmem:[%s1 + $0x1a8] sm:$0xff]
        %v447 = vld [vmem:[%s1 + $0x1b0] sm:$0xff]
        %v448 = vld [vmem:[%s1 + $0x1b8] sm:$0xff]
        %v449 = vld [vmem:[%s1 + $0x1c0] sm:$0xff]
        %v450 = vld [vmem:[%s1 + $0x1c8] sm:$0xff]
        %v451 = vld [vmem:[%s1 + $0x1d0] sm:$0xff]
        %v452 = vld [vmem:[%s1 + $0x1d8] sm:$0xff]
        %v453 = vld [vmem:[%s1 + $0x1e0] sm:$0xff]
        %v454 = vld [vmem:[%s1 + $0x1e8] sm:$0xff]
        %v455 = vld [vmem:[%s1 + $0x1f0] sm:$0xff]
        %v456 = vld [vmem:[%s1 + $0x1f8] sm:$0xff]
        %v457 = vld [vmem:[%s1 + $0x200] sm:$0xff]
        %v458 = vld [vmem:[%s1 + $0x208] sm:$0xff]
        %v459 = vld [vmem:[%s1 + $0x210] sm:$0xff]
        %v460 = vld [vmem:[%s1 + $0x218] sm:$0xff]
        %v461 = vld [vmem:[%s1 + $0x220] sm:$0xff]
        %v462 = vld [vmem:[%s1 + $0x228] sm:$0xff]
        %v463 = vld [vmem:[%s1 + $0x230] sm:$0xff]
        %v464 = vld [vmem:[%s1 + $0x238] sm:$0xff]
        %v465 = vld [vmem:[%s1 + $0x240] sm:$0xff]
        %v466 = vld [vmem:[%s1 + $0x248] sm:$0xff]
        %v467 = vld [vmem:[%s1 + $0x250] sm:$0xff]
        %v468 = vld [vmem:[%s1 + $0x258] sm:$0xff]
        %v469 = vld [vmem:[%s1 + $0x260] sm:$0xff]
        %v470 = vld [vmem:[%s1 + $0x268] sm:$0xff]
        %v471 = vld [vmem:[%s1 + $0x270] sm:$0xff]
        %v472 = vld [vmem:[%s1 + $0x278] sm:$0xff]
        %v473 = vld [vmem:[%s1 + $0x280] sm:$0xff]
        %v474 = vld [vmem:[%s1 + $0x288] sm:$0xff]
        %v475 = vld [vmem:[%s1 + $0x290] sm:$0xff]
        %v476 = vld [vmem:[%s1 + $0x298] sm:$0xff]
        %v477 = vld [vmem:[%s1 + $0x2a0] sm:$0xff]
        %v478 = vld [vmem:[%s1 + $0x2a8] sm:$0xff]
        %v479 = vld [vmem:[%s1 + $0x2b0] sm:$0xff]
        %v480 = vld [vmem:[%s1 + $0x2b8] sm:$0xff]
        %v481 = vld [vmem:[%s1 + $0x2c0] sm:$0xff]
        %v482 = vld [vmem:[%s1 + $0x2c8] sm:$0xff]
        %v483 = vld [vmem:[%s1 + $0x2d0] sm:$0xff]
        %v484 = vld [vmem:[%s1 + $0x2d8] sm:$0xff]
        %v485 = vld [vmem:[%s1 + $0x2e0] sm:$0xff]
        %v486 = vld [vmem:[%s1 + $0x2e8] sm:$0xff]
        %v487 = vld [vmem:[%s1 + $0x2f0] sm:$0xff]
        %v488 = vld [vmem:[%s1 + $0x2f8] sm:$0xff]
        %v489 = vld [vmem:[%s1 + $0x300] sm:$0xff]
        %v490 = vld [vmem:[%s1 + $0x308] sm:$0xff]
        %v491 = vld [vmem:[%s1 + $0x310] sm:$0xff]
        %v492 = vld [vmem:[%s1 + $0x318] sm:$0xff]
        %v493 = vld [vmem:[%s1 + $0x320] sm:$0xff]
        %v494 = vld [vmem:[%s1 + $0x328] sm:$0xff]
        %v495 = vld [vmem:[%s1 + $0x330] sm:$0xff]
        %v496 = vld [vmem:[%s1 + $0x338] sm:$0xff]
        %v497 = vld [vmem:[%s1 + $0x340] sm:$0xff]
        %v498 = vld [vmem:[%s1 + $0x348] sm:$0xff]
        %v499 = vld [vmem:[%s1 + $0x350] sm:$0xff]
        %v500 = vld [vmem:[%s1 + $0x358] sm:$0xff]
        %v501 = vld [vmem:[%s1 + $0x360] sm:$0xff]
        %v502 = vld [vmem:[%s1 + $0x368] sm:$0xff]
        %v503 = vld [vmem:[%s1 + $0x370] sm:$0xff]
        %v504 = vld [vmem:[%s1 + $0x378] sm:$0xff]
        %v505 = vld [vmem:[%s1 + $0x380] sm:$0xff]
        %v506 = vld [vmem:[%s1 + $0x388] sm:$0xff]
        %v507 = vld [vmem:[%s1 + $0x390] sm:$0xff]
        %v508 = vld [vmem:[%s1 + $0x398] sm:$0xff]
        %v509 = vld [vmem:[%s1 + $0x3a0] sm:$0xff]
        %v510 = vld [vmem:[%s1 + $0x3a8] sm:$0xff]
        %v511 = vld [vmem:[%s1 + $0x3b0] sm:$0xff]
        %v512 = vld [vmem:[%s1 + $0x3b8] sm:$0xff]
        %v513 = vld [vmem:[%s1 + $0x3c0] sm:$0xff]
        %v514 = vld [vmem:[%s1 + $0x3c8] sm:$0xff]
        %v515 = vld [vmem:[%s1 + $0x3d0] sm:$0xff]
        %v516 = vld [vmem:[%s1 + $0x3d8] sm:$0xff]
        %v517 = vld [vmem:[%s1 + $0x3e0] sm:$0xff]
        %v518 = vld [vmem:[%s1 + $0x3e8] sm:$0xff]
        %v519 = vld [vmem:[%s1 + $0x3f0] sm:$0xff]
        %v520 = vld [vmem:[%s1 + $0x3f8] sm:$0xff]
        %v521 = vld [vmem:[%s2] sm:$0x1]
        %v523 = vperm.slane %v521, 0
        %525 = vmatpush.msra.mxu0 %v408
        %526 = vmatpush.msra.mxu0 %v407
        %527 = vmatpush.msra.mxu0 %v406
        %528 = vmatpush.msra.mxu0 %v405
        %529 = vmatpush.msra.mxu0 %v404
        %530 = vmatpush.msra.mxu0 %v403
        %531 = vmatpush.msra.mxu0 %v402
        %532 = vmatpush.msra.mxu0 %v401
        %533 = vmatpush.msra.mxu0 %v400
        %534 = vmatpush.msra.mxu0 %v399
        %535 = vmatpush.msra.mxu0 %v398
        %536 = vmatpush.msra.mxu0 %v397
        %537 = vmatpush.msra.mxu0 %v396
        %538 = vmatpush.msra.mxu0 %v395
        %539 = vmatpush.msra.mxu0 %v394
        %540 = vmatpush.msra.mxu0 %v393
        %541 = vmatmul.f32.gmra.mxu0 %v385
        %v542 = vpop.f32.mrf.mxu0
        %v543 = vadd.f32 %v523, %v542
        %544 = vdwg.mxu0
        %545 = vmatpush.msra.mxu0 %v424
        %546 = vmatpush.msra.mxu0 %v423
        %547 = vmatpush.msra.mxu0 %v422
        %548 = vmatpush.msra.mxu0 %v421
        %549 = vmatpush.msra.mxu0 %v420
        %550 = vmatpush.msra.mxu0 %v419
        %551 = vmatpush.msra.mxu0 %v418
        %552 = vmatpush.msra.mxu0 %v417
        %553 = vmatpush.msra.mxu0 %v416
        %554 = vmatpush.msra.mxu0 %v415
        %555 = vmatpush.msra.mxu0 %v414
        %556 = vmatpush.msra.mxu0 %v413
        %557 = vmatpush.msra.mxu0 %v412
        %558 = vmatpush.msra.mxu0 %v411
        %559 = vmatpush.msra.mxu0 %v410
        %560 = vmatpush.msra.mxu0 %v409
        %561 = vmatmul.f32.gmra.mxu0 %v386
        %v562 = vpop.f32.mrf.mxu0
        %v563 = vadd.f32 %v543, %v562
        %564 = vdwg.mxu0
        %565 = vmatpush.msra.mxu0 %v440
        %566 = vmatpush.msra.mxu0 %v439
        %567 = vmatpush.msra.mxu0 %v438
        %568 = vmatpush.msra.mxu0 %v437
        %569 = vmatpush.msra.mxu0 %v436
        %570 = vmatpush.msra.mxu0 %v435
        %571 = vmatpush.msra.mxu0 %v434
        %572 = vmatpush.msra.mxu0 %v433
        %573 = vmatpush.msra.mxu0 %v432
        %574 = vmatpush.msra.mxu0 %v431
        %575 = vmatpush.msra.mxu0 %v430
        %576 = vmatpush.msra.mxu0 %v429
        %577 = vmatpush.msra.mxu0 %v428
        %578 = vmatpush.msra.mxu0 %v427
        %579 = vmatpush.msra.mxu0 %v426
        %580 = vmatpush.msra.mxu0 %v425
        %581 = vmatmul.f32.gmra.mxu0 %v387
        %v582 = vpop.f32.mrf.mxu0
        %v583 = vadd.f32 %v563, %v582
        %584 = vdwg.mxu0
        %585 = vmatpush.msra.mxu0 %v456
        %586 = vmatpush.msra.mxu0 %v455
        %587 = vmatpush.msra.mxu0 %v454
        %588 = vmatpush.msra.mxu0 %v453
        %589 = vmatpush.msra.mxu0 %v452
        %590 = vmatpush.msra.mxu0 %v451
        %591 = vmatpush.msra.mxu0 %v450
        %592 = vmatpush.msra.mxu0 %v449
        %593 = vmatpush.msra.mxu0 %v448
        %594 = vmatpush.msra.mxu0 %v447
        %595 = vmatpush.msra.mxu0 %v446
        %596 = vmatpush.msra.mxu0 %v445
        %597 = vmatpush.msra.mxu0 %v444
        %598 = vmatpush.msra.mxu0 %v443
        %599 = vmatpush.msra.mxu0 %v442
        %600 = vmatpush.msra.mxu0 %v441
        %601 = vmatmul.f32.gmra.mxu0 %v388
        %v602 = vpop.f32.mrf.mxu0
        %v603 = vadd.f32 %v583, %v602
        %604 = vdwg.mxu0
        %605 = vmatpush.msra.mxu0 %v472
        %606 = vmatpush.msra.mxu0 %v471
        %607 = vmatpush.msra.mxu0 %v470
        %608 = vmatpush.msra.mxu0 %v469
        %609 = vmatpush.msra.mxu0 %v468
        %610 = vmatpush.msra.mxu0 %v467
        %611 = vmatpush.msra.mxu0 %v466
        %612 = vmatpush.msra.mxu0 %v465
        %613 = vmatpush.msra.mxu0 %v464
        %614 = vmatpush.msra.mxu0 %v463
        %615 = vmatpush.msra.mxu0 %v462
        %616 = vmatpush.msra.mxu0 %v461
        %617 = vmatpush.msra.mxu0 %v460
        %618 = vmatpush.msra.mxu0 %v459
        %619 = vmatpush.msra.mxu0 %v458
        %620 = vmatpush.msra.mxu0 %v457
        %621 = vmatmul.f32.gmra.mxu0 %v389
        %v622 = vpop.f32.mrf.mxu0
        %v623 = vadd.f32 %v603, %v622
        %624 = vdwg.mxu0
        %625 = vmatpush.msra.mxu0 %v488
        %626 = vmatpush.msra.mxu0 %v487
        %627 = vmatpush.msra.mxu0 %v486
        %628 = vmatpush.msra.mxu0 %v485
        %629 = vmatpush.msra.mxu0 %v484
        %630 = vmatpush.msra.mxu0 %v483
        %631 = vmatpush.msra.mxu0 %v482
        %632 = vmatpush.msra.mxu0 %v481
        %633 = vmatpush.msra.mxu0 %v480
        %634 = vmatpush.msra.mxu0 %v479
        %635 = vmatpush.msra.mxu0 %v478
        %636 = vmatpush.msra.mxu0 %v477
        %637 = vmatpush.msra.mxu0 %v476
        %638 = vmatpush.msra.mxu0 %v475
        %639 = vmatpush.msra.mxu0 %v474
        %640 = vmatpush.msra.mxu0 %v473
        %641 = vmatmul.f32.gmra.mxu0 %v390
        %v642 = vpop.f32.mrf.mxu0
        %v643 = vadd.f32 %v623, %v642
        %644 = vdwg.mxu0
        %645 = vmatpush.msra.mxu0 %v504
        %646 = vmatpush.msra.mxu0 %v503
        %647 = vmatpush.msra.mxu0 %v502
        %648 = vmatpush.msra.mxu0 %v501
        %649 = vmatpush.msra.mxu0 %v500
        %650 = vmatpush.msra.mxu0 %v499
        %651 = vmatpush.msra.mxu0 %v498
        %652 = vmatpush.msra.mxu0 %v497
        %653 = vmatpush.msra.mxu0 %v496
        %654 = vmatpush.msra.mxu0 %v495
        %655 = vmatpush.msra.mxu0 %v494
        %656 = vmatpush.msra.mxu0 %v493
        %657 = vmatpush.msra.mxu0 %v492
        %658 = vmatpush.msra.mxu0 %v491
        %659 = vmatpush.msra.mxu0 %v490
        %660 = vmatpush.msra.mxu0 %v489
        %661 = vmatmul.f32.gmra.mxu0 %v391
        %v662 = vpop.f32.mrf.mxu0
        %v663 = vadd.f32 %v643, %v662
        %664 = vdwg.mxu0
        %665 = vmatpush.msra.mxu0 %v520
        %666 = vmatpush.msra.mxu0 %v519
        %667 = vmatpush.msra.mxu0 %v518
        %668 = vmatpush.msra.mxu0 %v517
        %669 = vmatpush.msra.mxu0 %v516
        %670 = vmatpush.msra.mxu0 %v515
        %671 = vmatpush.msra.mxu0 %v514
        %672 = vmatpush.msra.mxu0 %v513
        %673 = vmatpush.msra.mxu0 %v512
        %674 = vmatpush.msra.mxu0 %v511
        %675 = vmatpush.msra.mxu0 %v510
        %676 = vmatpush.msra.mxu0 %v509
        %677 = vmatpush.msra.mxu0 %v508
        %678 = vmatpush.msra.mxu0 %v507
        %679 = vmatpush.msra.mxu0 %v506
        %680 = vmatpush.msra.mxu0 %v505
        %681 = vmatmul.f32.gmra.mxu0 %v392
        %v682 = vpop.f32.mrf.mxu0
        %v683 = vadd.f32 %v663, %v682
        %684 = vdwg.mxu0
        %v685 = vmax.f32 %v683, 0.0
        %v686 = vld [vmem:[%s3] sm:$0xff]
        %v687 = vld [vmem:[%s3 + $0x8] sm:$0xff]
        %v688 = vld [vmem:[%s3 + $0x10] sm:$0xff]
        %v689 = vld [vmem:[%s3 + $0x18] sm:$0xff]
        %v690 = vld [vmem:[%s4] sm:$0x1]
        %v692 = vperm.slane %v690, 0
        %vm694 = vcmask 261120
        %v696 = vsel %vm694, %v685, 0
        %698 = vmatpush.msra.mxu0 0.0
        %699 = vmatpush.msra.mxu0 0.0
        %700 = vmatpush.msra.mxu0 0.0
        %701 = vmatpush.msra.mxu0 0.0
        %702 = vmatpush.msra.mxu0 0.0
        %703 = vmatpush.msra.mxu0 0.0
        %704 = vmatpush.msra.mxu0 0.0
        %705 = vmatpush.msra.mxu0 0.0
        %706 = vmatpush.msra.mxu0 0.0
        %707 = vmatpush.msra.mxu0 0.0
        %708 = vmatpush.msra.mxu0 0.0
        %709 = vmatpush.msra.mxu0 0.0
        %710 = vmatpush.msra.mxu0 %v689
        %711 = vmatpush.msra.mxu0 %v688
        %712 = vmatpush.msra.mxu0 %v687
        %713 = vmatpush.msra.mxu0 %v686
        %714 = vmatmul.f32.gmra.mxu0 %v696
        %v715 = vpop.f32.mrf.mxu0
        %v716 = vadd.f32 %v692, %v715
        %717 = vdwg.mxu0
        %v718 = vmax.f32 %v716, 0.0
        %v719 = vld [vmem:[%s5] sm:$0xff]
        %v720 = vld [vmem:[%s5 + $0x8] sm:$0xff]
        %v721 = vld [vmem:[%s5 + $0x10] sm:$0xff]
        %v722 = vld [vmem:[%s5 + $0x18] sm:$0xff]
        %v723 = vld [vmem:[%s6] sm:$0x1]
        %v725 = vperm.slane %v723, 0
        %v728 = vsel %vm694, %v718, 0
        %730 = vmatpush.msra.mxu0 0.0
        %731 = vmatpush.msra.mxu0 0.0
        %732 = vmatpush.msra.mxu0 0.0
        %733 = vmatpush.msra.mxu0 0.0
        %734 = vmatpush.msra.mxu0 0.0
        %735 = vmatpush.msra.mxu0 0.0
        %736 = vmatpush.msra.mxu0 0.0
        %737 = vmatpush.msra.mxu0 0.0
        %738 = vmatpush.msra.mxu0 0.0
        %739 = vmatpush.msra.mxu0 0.0
        %740 = vmatpush.msra.mxu0 0.0
        %741 = vmatpush.msra.mxu0 0.0
        %742 = vmatpush.msra.mxu0 %v722
        %743 = vmatpush.msra.mxu0 %v721
        %744 = vmatpush.msra.mxu0 %v720
        %745 = vmatpush.msra.mxu0 %v719
        %746 = vmatmul.f32.gmra.mxu0 %v728
        %v747 = vpop.f32.mrf.mxu0
        %v748 = vadd.f32 %v725, %v747
        %749 = vdwg.mxu0
        %v750 = vmax.f32 %v748, 0.0
        %v751 = vld [vmem:[%s7] sm:$0xff]
        %v752 = vld [vmem:[%s7 + $0x8] sm:$0xff]
        %v753 = vld [vmem:[%s7 + $0x10] sm:$0xff]
        %v754 = vld [vmem:[%s7 + $0x18] sm:$0xff]
        %v755 = vld [vmem:[%s8] sm:$0x1]
        %v757 = vperm.slane %v755, 0
        %v760 = vsel %vm694, %v750, 0
        %762 = vmatpush.msra.mxu0 0.0
        %763 = vmatpush.msra.mxu0 0.0
        %764 = vmatpush.msra.mxu0 0.0
        %765 = vmatpush.msra.mxu0 0.0
        %766 = vmatpush.msra.mxu0 0.0
        %767 = vmatpush.msra.mxu0 0.0
        %768 = vmatpush.msra.mxu0 0.0
        %769 = vmatpush.msra.mxu0 0.0
        %770 = vmatpush.msra.mxu0 0.0
        %771 = vmatpush.msra.mxu0 0.0
        %772 = vmatpush.msra.mxu0 0.0
        %773 = vmatpush.msra.mxu0 0.0
        %774 = vmatpush.msra.mxu0 %v754
        %775 = vmatpush.msra.mxu0 %v753
        %776 = vmatpush.msra.mxu0 %v752
        %777 = vmatpush.msra.mxu0 %v751
        %778 = vmatmul.f32.gmra.mxu0 %v760
        %v779 = vpop.f32.mrf.mxu0
        %v780 = vadd.f32 %v757, %v779
        %781 = vdwg.mxu0
        %v782 = vmax.f32 %v780, 0.0
        %v783 = vld [vmem:[%s9] sm:$0xff]
        %v784 = vld [vmem:[%s9 + $0x8] sm:$0xff]
        %v785 = vld [vmem:[%s10] sm:$0x1]
        %v787 = vperm.slane %v785, 0
        %vm789 = vcmask 130048
        %v791 = vsel %vm789, %v782, 0
        %793 = vmatpush.msra.mxu0 0.0
        %794 = vmatpush.msra.mxu0 0.0
        %795 = vmatpush.msra.mxu0 0.0
        %796 = vmatpush.msra.mxu0 0.0
        %797 = vmatpush.msra.mxu0 0.0
        %798 = vmatpush.msra.mxu0 0.0
        %799 = vmatpush.msra.mxu0 0.0
        %800 = vmatpush.msra.mxu0 0.0
        %801 = vmatpush.msra.mxu0 0.0
        %802 = vmatpush.msra.mxu0 0.0
        %803 = vmatpush.msra.mxu0 0.0
        %804 = vmatpush.msra.mxu0 0.0
        %805 = vmatpush.msra.mxu0 0.0
        %806 = vmatpush.msra.mxu0 0.0
        %807 = vmatpush.msra.mxu0 %v784
        %808 = vmatpush.msra.mxu0 %v783
        %809 = vmatmul.f32.gmra.mxu0 %v791
        %v810 = vpop.f32.mrf.mxu0
        %v811 = vadd.f32 %v787, %v810
        %812 = vdwg.mxu0
        %813 = vst [vmem:[%s379] sm:$0xff] %v811
        %s814 = sand.u32 %s269, 1
        %s815 = scalar_lea.sflag [#allocation3], %s814
        %s816 = sand.u32 %s269, 1
        %s817 = smul.addr %s816, 8
        %s818 = scalar_lea.vmem [#allocation2], %s817
        // Predicated region
        $region65: #{tpu_custom_call.1} parent=63 // pred_check
          %p819 = pneg %p279
        $region66: #{tpu_custom_call.1} parent=63 // pred_check_branch
          %821 = sbr.rel (%p819) target = $region68
        $region67: #{tpu_custom_call.1} parent=63 // pred_region
          %823 = vsyncadd %s815, 0
          %s824 = smul.addr %s25, 8
          %s825 = scalar_lea.hbm %s11, %s824
          %s827 = sshll.u32 %s818, 4
          %s828 = int_to_ptr.vmem [resolvable:$true] %s827
          %s829 = sshll.u32 %s825, 4
          %s830 = int_to_ptr.hbm [resolvable:$true] %s829
          %832 = dma.vmem_to_hbm [thread:$0]  %s828, 128, %s830, %s815
        $region68: #{tpu_custom_call.1} parent=63 // pred_fallthru
          _
      $region64: #{tpu_custom_call.1} parent=5 // pred_fallthru
        _
      %p833 = scmp.le.s32.totalorder 2, %s20
      // Predicated region
      $region69: #{tpu_custom_call.1} parent=5 // pred_check
        %p834 = pneg %p833
      $region70: #{tpu_custom_call.1} parent=5 // pred_check_branch
        %836 = sbr.rel (%p834) target = $region72
      $region71: #{tpu_custom_call.1} parent=5 // pred_region
        %s837 = ssub.s32 %s20, 2
        // Predicated region
        $region73: #{tpu_custom_call.1} parent=71 // pred_check
          %p838 = pneg %p285
        $region74: #{tpu_custom_call.1} parent=71 // pred_check_branch
          %840 = sbr.rel (%p838) target = $region76
        $region75: #{tpu_custom_call.1} parent=71 // pred_region
          %s841 = sand.u32 %s270, 1
          %s842 = scalar_lea.sflag [#allocation3], %s841
          %s843 = sand.u32 %s270, 1
          %s844 = smul.addr %s843, 8
          %s845 = scalar_lea.vmem [#allocation2], %s844
          %847 = dma.done %s842, 128
        $region76: #{tpu_custom_call.1} parent=71 // pred_fallthru
          _
      $region72: #{tpu_custom_call.1} parent=5 // pred_fallthru
        _
    $region6: #{tpu_custom_call.1} parent=1 // loop_footer
      %s24 = sadd.s32 1, %s20
    $region7: #{tpu_custom_call.1} parent=1 // loop_footer_branch
      %19 = sbr.rel target = $region3
    $region8: #{tpu_custom_call.1} parent=1 // loop_exit
      _
    %848 = vsyncpa [#allocation3], 1
    %s849 = scalar_lea.sflag [#allocation3], 1
    %850 = vsyncpa %s849, 1

</llo_original>
